<compile_context>
chip_gen: v5e
topology: v5e:2x2
jax: 0.10.0
libtpu: 0.0.40
codegen_flags: <defaults>
</compile_context>

<pallas_src>
import jax
import jax.numpy as jnp
from jax.experimental import pallas as pl
from jax.experimental.pallas import tpu as pltpu

EPS = 1e-5
LANES = 128


# --------------------------------------------------------------------------- #
# Kernels
# --------------------------------------------------------------------------- #
def _kernel_plain(x_ref, y_ref, g_ref, b_ref, o_ref):
    """Residual add + LayerNorm over the full last axis of the tile."""
    s = x_ref[...].astype(jnp.float32) + y_ref[...].astype(jnp.float32)
    mean = jnp.mean(s, axis=-1, keepdims=True)
    c = s - mean
    var = jnp.mean(c * c, axis=-1, keepdims=True)
    out = c * jax.lax.rsqrt(var + EPS) * g_ref[...] + b_ref[...]
    o_ref[...] = out.astype(o_ref.dtype)


def _make_kernel_packed(h):
    """pack = 128//h logical rows folded into one lane-dense 128-wide row.

    Per-h-lane-segment mean/var via a precomputed block-diagonal (128,128) ones
    matrix (resident input) on the MXU, keeping all loads/stores full-lane.
    """
    inv_h = 1.0 / float(h)

    def kernel(x_ref, y_ref, g_ref, b_ref, seg_ref, o_ref):
        s = x_ref[...].astype(jnp.float32) + y_ref[...].astype(jnp.float32)
        seg = seg_ref[...]
        # HIGHEST precision required: DEFAULT truncates s to bf16 pre-sum.
        mean = jnp.dot(s, seg, preferred_element_type=jnp.float32,
                       precision=jax.lax.Precision.HIGHEST) * inv_h
        c = s - mean
        var = jnp.dot(c * c, seg, preferred_element_type=jnp.float32,
                      precision=jax.lax.Precision.HIGHEST) * inv_h
        out = c * jax.lax.rsqrt(var + EPS) * g_ref[...] + b_ref[...]
        o_ref[...] = out.astype(o_ref.dtype)

    return kernel


# --------------------------------------------------------------------------- #
# Tile-size / VMEM selection
# --------------------------------------------------------------------------- #
def _vmem_capacity_bytes():
    try:
        return int(pltpu.get_tpu_info().vmem_capacity_bytes)
    except Exception:
        return 64 * 1024 * 1024  # conservative (v7x per-TC)


def _num_tensorcores():
    # v5e / v6e: 1 TC per chip; v7x: 2 TCs per chip.
    try:
        kind = jax.devices()[0].device_kind.lower()
        if "v7" in kind:
            return 2
    except Exception:
        pass
    return 1


def _sublane_min(dtype):
    return {4: 8, 2: 16, 1: 32}.get(jnp.dtype(dtype).itemsize, 8)


def _round_up(x, m):
    return ((x + m - 1) // m) * m


def _choose_row_tile(rows, width, io_itemsize, sublane, num_cores):
    vmem_cap = _vmem_capacity_bytes()
    # Steady-state VMEM bytes per row:
    #   double-buffered x, y, out tiles (3 streams x 2 buffers)
    # + ~4 live f32 temporaries of the compute tile (s, c, c*c, normalized out).
    bytes_per_row = 3 * 2 * width * io_itemsize + 4 * width * 4
    budget = int(0.25 * vmem_cap)
    cap = max(sublane, budget // max(bytes_per_row, 1))
    cap = max(sublane, (cap // sublane) * sublane)
    cap = min(cap, 2048)  # measured: ~1k rows already reaches ~85% of HBM roofline

    # Never emit a 1-step grid when >1 TensorCore: split so "parallel" shards.
    if num_cores > 1 and rows > sublane:
        half = _round_up(pl.cdiv(rows, 2), sublane)
        cap = min(cap, max(sublane, half))

    if rows <= cap:
        return rows  # single full-extent block (always a legal block shape)

    # Prefer an exact divisor (no padded tail), but never drop below ~cap//2 or
    # a ~1 MiB block-bytes floor -- tiny tiles cost far more than one padded
    # tail block (per-step overhead ~0.35us, <30% roofline at sublane tiles).
    floor_rows = max(sublane,
                     (1 * 1024 * 1024) // max(bytes_per_row, 1),
                     cap // 2)
    floor_rows = max(sublane, (floor_rows // sublane) * sublane)
    t = cap
    while t >= floor_rows:
        if rows % t == 0:
            return t
        t -= sublane
    return cap  # padded tail block; rows are independent, padding is discarded


# --------------------------------------------------------------------------- #
# Wrapper
# --------------------------------------------------------------------------- #
def add_norm(x, y, gamma, beta):
    """x, y: (batch, seq, hidden); gamma, beta: (hidden,). LayerNorm over hidden."""
    assert x.shape == y.shape
    b, s, h = x.shape
    assert gamma.shape == (h,) and beta.shape == (h,)
    rows = b * s

    # Hoist affine-param casts out of the kernel (once, not per grid step).
    g32 = gamma.astype(jnp.float32)
    b32 = beta.astype(jnp.float32)

    # Lane-dense packing whenever hidden is a small divisor of 128; pad rows up
    # to a multiple of the packing factor so we never fall back to masked
    # partial stores for narrow hidden.
    use_pack = (h < LANES) and (LANES % h == 0)

    io_itemsize = jnp.dtype(x.dtype).itemsize
    sublane = _sublane_min(x.dtype)
    num_cores = _num_tensorcores()

    if use_pack:
        pack = LANES // h
        width = LANES
        rows_pad = _round_up(rows, pack)
        x2 = x.reshape(rows, h)
        y2 = y.reshape(rows, h)
        if rows_pad != rows:
            padding = ((0, rows_pad - rows), (0, 0))
            x2 = jnp.pad(x2, padding)
            y2 = jnp.pad(y2, padding)
        rows_eff = rows_pad // pack
        x2 = x2.reshape(rows_eff, width)
        y2 = y2.reshape(rows_eff, width)
        g2 = jnp.tile(g32, pack).reshape(1, width)
        bt2 = jnp.tile(b32, pack).reshape(1, width)
        # Block-diagonal segment matrix, built once (resident input).
        seg_idx = jnp.arange(LANES, dtype=jnp.int32) // h
        seg = (seg_idx[:, None] == seg_idx[None, :]).astype(jnp.float32)
        kernel = _make_kernel_packed(h)
    else:
        pack = 1
        width = h
        rows_pad = rows
        rows_eff = rows
        x2 = x.reshape(rows_eff, width)
        y2 = y.reshape(rows_eff, width)
        g2 = g32.reshape(1, width)
        bt2 = b32.reshape(1, width)
        seg = None
        kernel = _kernel_plain

    row_tile = _choose_row_tile(rows_eff, width, io_itemsize, sublane, num_cores)
    num_tiles = pl.cdiv(rows_eff, row_tile)

    # Scoped VMEM: double-buffered I/O tiles + ~4 live f32 temps of the compute
    # tile (+ the resident seg / gamma / beta blocks).
    bytes_per_row = 3 * 2 * width * io_itemsize + 4 * width * 4
    resident_bytes = 2 * width * 4 + (LANES * LANES * 4 if use_pack else 0)
    need = row_tile * bytes_per_row + resident_bytes
    vmem_limit = max(int(need * 1.25), 32 * 1024 * 1024)
    vmem_limit = min(vmem_limit, int(0.75 * _vmem_capacity_bytes()))

    row_spec = pl.BlockSpec((row_tile, width), lambda i: (i, 0))
    param_spec = pl.BlockSpec((1, width), lambda i: (0, 0))
    in_specs = [row_spec, row_spec, param_spec, param_spec]
    args = [x2, y2, g2, bt2]
    if use_pack:
        in_specs.append(pl.BlockSpec((LANES, LANES), lambda i: (0, 0)))
        args.append(seg)

    out = pl.pallas_call(
        kernel,
        out_shape=jax.ShapeDtypeStruct((rows_eff, width), x.dtype),
        grid_spec=pltpu.PrefetchScalarGridSpec(
            num_scalar_prefetch=0,
            grid=(num_tiles,),
            in_specs=in_specs,
            out_specs=row_spec,
        ),
        compiler_params=pltpu.CompilerParams(
            dimension_semantics=("parallel",),
            vmem_limit_bytes=int(vmem_limit),
        ),
    )(*args)

    if use_pack:
        out = out.reshape(rows_pad, h)
        if rows_pad != rows:
            out = out[:rows]
        return out.reshape(b, s, h)
    return out.reshape(b, s, h)


def add_norm_ref(x, y, gamma, beta):
    s = (x + y).astype(jnp.float32)
    mean = jnp.mean(s, axis=-1, keepdims=True)
    c = s - mean
    var = jnp.mean(c * c, axis=-1, keepdims=True)
    return ((c * jax.lax.rsqrt(var + EPS)) * gamma + beta).astype(x.dtype)


if __name__ == "__main__":
    key = jax.random.PRNGKey(0)

    # --- primary case: hidden=32 (lane-packed path), LayerNorm default init ---
    batch, seq, hidden = 2, 8, 32
    kx, ky, kg, kb = jax.random.split(key, 4)
    X = jax.random.normal(kx, (batch, seq, hidden), dtype=jnp.float32)
    Y = jax.random.normal(ky, (batch, seq, hidden), dtype=jnp.float32)
    gamma = jnp.ones((hidden,), dtype=jnp.float32)   # nn.LayerNorm default weight
    beta = jnp.zeros((hidden,), dtype=jnp.float32)   # nn.LayerNorm default bias

    out = jax.block_until_ready(add_norm(X, Y, gamma, beta))
    ref = add_norm_ref(X, Y, gamma, beta)
    assert out.shape == (batch, seq, hidden)
    assert jnp.max(jnp.abs(out - ref)) < 2e-5

    # --- secondary case: hidden=256 (lane-dense plain path), non-trivial affine ---
    hidden2 = 256
    X2 = jax.random.normal(kx, (batch, seq, hidden2), dtype=jnp.float32)
    Y2 = jax.random.normal(ky, (batch, seq, hidden2), dtype=jnp.float32)
    gamma2 = 1.0 + 0.1 * jax.random.normal(kg, (hidden2,), dtype=jnp.float32)
    beta2 = 0.1 * jax.random.normal(kb, (hidden2,), dtype=jnp.float32)

    out2 = jax.block_until_ready(add_norm(X2, Y2, gamma2, beta2))
    ref2 = add_norm_ref(X2, Y2, gamma2, beta2)
    assert out2.shape == (batch, seq, hidden2)
    assert jnp.max(jnp.abs(out2 - ref2)) < 2e-5

    # --- third case: rows not a multiple of the packing factor (pad path) ---
    batch3, seq3, hidden3 = 1, 5, 32   # rows=5, pack=4 -> padded to 8
    X3 = jax.random.normal(kx, (batch3, seq3, hidden3), dtype=jnp.float32)
    Y3 = jax.random.normal(ky, (batch3, seq3, hidden3), dtype=jnp.float32)
    gamma3 = 1.0 + 0.1 * jax.random.normal(kg, (hidden3,), dtype=jnp.float32)
    beta3 = 0.1 * jax.random.normal(kb, (hidden3,), dtype=jnp.float32)

    out3 = jax.block_until_ready(add_norm(X3, Y3, gamma3, beta3))
    ref3 = add_norm_ref(X3, Y3, gamma3, beta3)
    assert out3.shape == (batch3, seq3, hidden3)
    assert jnp.max(jnp.abs(out3 - ref3)) < 2e-5

    print("KERNEL_OK")
</pallas_src>

<mosaic_0001>
module attributes {stable_mosaic.version = 11 : i64} {
  func.func @kernel(%arg0: i32, %arg1: memref<4x128xf32, #tpu.memory_space<vmem>>, %arg2: memref<4x128xf32, #tpu.memory_space<vmem>>, %arg3: memref<1x128xf32, #tpu.memory_space<vmem>>, %arg4: memref<1x128xf32, #tpu.memory_space<vmem>>, %arg5: memref<128x128xf32, #tpu.memory_space<vmem>>, %arg6: memref<4x128xf32, #tpu.memory_space<vmem>>) attributes {dimension_semantics = [#tpu.dimension_semantics<parallel>], iteration_bounds = array<i64: 1>, scalar_prefetch = 0 : i64, scratch_operands = 0 : i64, tpu.core_type = #tpu.core_type<tc>, window_params = [{transform_indices = @transform_0, window_bounds = array<i64: 4, 128>}, {transform_indices = @transform_1, window_bounds = array<i64: 4, 128>}, {pipeline_mode = #tpu.pipeline_mode<synchronous>, transform_indices = @transform_2, window_bounds = array<i64: 1, 128>}, {pipeline_mode = #tpu.pipeline_mode<synchronous>, transform_indices = @transform_3, window_bounds = array<i64: 1, 128>}, {pipeline_mode = #tpu.pipeline_mode<synchronous>, transform_indices = @transform_4, window_bounds = array<i64: 128, 128>}, {transform_indices = @transform_5, window_bounds = array<i64: 4, 128>}]} {
    %c0 = arith.constant 0 : index
    %c0_0 = arith.constant 0 : index
    %0 = vector.load %arg1[%c0, %c0_0] : memref<4x128xf32, #tpu.memory_space<vmem>>, vector<4x128xf32>
    %c0_1 = arith.constant 0 : index
    %c0_2 = arith.constant 0 : index
    %1 = vector.load %arg2[%c0_1, %c0_2] : memref<4x128xf32, #tpu.memory_space<vmem>>, vector<4x128xf32>
    %2 = arith.addf %0, %1 : vector<4x128xf32>
    %c0_3 = arith.constant 0 : index
    %c0_4 = arith.constant 0 : index
    %3 = vector.load %arg5[%c0_3, %c0_4] : memref<128x128xf32, #tpu.memory_space<vmem>>, vector<128x128xf32>
    %cst = arith.constant dense<0.000000e+00> : vector<4x128xf32>
    %4 = tpu.matmul %2, %3, %cst {dimension_numbers = #tpu.dot_dimension_numbers<[1], [0], [0], [1], [0, 0, 1, 1], [], []>, precision = #tpu.contract_precision<fp32>} : vector<4x128xf32>, vector<128x128xf32>, vector<4x128xf32> -> vector<4x128xf32>
    %cst_5 = arith.constant 3.125000e-02 : f32
    %5 = vector.broadcast %cst_5 : f32 to vector<4x128xf32>
    %6 = arith.mulf %4, %5 : vector<4x128xf32>
    %7 = arith.subf %2, %6 : vector<4x128xf32>
    %8 = arith.mulf %7, %7 : vector<4x128xf32>
    %cst_6 = arith.constant dense<0.000000e+00> : vector<4x128xf32>
    %9 = tpu.matmul %8, %3, %cst_6 {dimension_numbers = #tpu.dot_dimension_numbers<[1], [0], [0], [1], [0, 0, 1, 1], [], []>, precision = #tpu.contract_precision<fp32>} : vector<4x128xf32>, vector<128x128xf32>, vector<4x128xf32> -> vector<4x128xf32>
    %cst_7 = arith.constant 3.125000e-02 : f32
    %10 = vector.broadcast %cst_7 : f32 to vector<4x128xf32>
    %11 = arith.mulf %9, %10 : vector<4x128xf32>
    %cst_8 = arith.constant 9.99999974E-6 : f32
    %12 = vector.broadcast %cst_8 : f32 to vector<4x128xf32>
    %13 = arith.addf %11, %12 : vector<4x128xf32>
    %14 = math.rsqrt %13 : vector<4x128xf32>
    %15 = arith.mulf %7, %14 : vector<4x128xf32>
    %c0_9 = arith.constant 0 : index
    %c0_10 = arith.constant 0 : index
    %16 = vector.load %arg3[%c0_9, %c0_10] : memref<1x128xf32, #tpu.memory_space<vmem>>, vector<1x128xf32>
    %17 = vector.broadcast %16 : vector<1x128xf32> to vector<4x128xf32>
    %18 = arith.mulf %15, %17 : vector<4x128xf32>
    %c0_11 = arith.constant 0 : index
    %c0_12 = arith.constant 0 : index
    %19 = vector.load %arg4[%c0_11, %c0_12] : memref<1x128xf32, #tpu.memory_space<vmem>>, vector<1x128xf32>
    %20 = vector.broadcast %19 : vector<1x128xf32> to vector<4x128xf32>
    %21 = arith.addf %18, %20 : vector<4x128xf32>
    %c0_13 = arith.constant 0 : index
    %c0_14 = arith.constant 0 : index
    %22 = vector.load %arg6[%c0_13, %c0_14] : memref<4x128xf32, #tpu.memory_space<vmem>>, vector<4x128xf32>
    tpu.vector_store %arg6[%c0_13, %c0_14], %21 {strides = array<i32>} : memref<4x128xf32, #tpu.memory_space<vmem>>, vector<4x128xf32>,
    return
  }
  func.func @transform_0(%arg0: i32) -> (i32, i32) {
    %c0_i32 = arith.constant 0 : i32
    %c0_i32_0 = arith.constant 0 : i32
    return %arg0, %c0_i32 : i32, i32
  }
  func.func @transform_1(%arg0: i32) -> (i32, i32) {
    %c0_i32 = arith.constant 0 : i32
    %c0_i32_0 = arith.constant 0 : i32
    return %arg0, %c0_i32 : i32, i32
  }
  func.func @transform_2(%arg0: i32) -> (i32, i32) {
    %c0_i32 = arith.constant 0 : i32
    %c0_i32_0 = arith.constant 0 : i32
    %c0_i32_1 = arith.constant 0 : i32
    return %c0_i32, %c0_i32_0 : i32, i32
  }
  func.func @transform_3(%arg0: i32) -> (i32, i32) {
    %c0_i32 = arith.constant 0 : i32
    %c0_i32_0 = arith.constant 0 : i32
    %c0_i32_1 = arith.constant 0 : i32
    return %c0_i32, %c0_i32_0 : i32, i32
  }
  func.func @transform_4(%arg0: i32) -> (i32, i32) {
    %c0_i32 = arith.constant 0 : i32
    %c0_i32_0 = arith.constant 0 : i32
    %c0_i32_1 = arith.constant 0 : i32
    return %c0_i32, %c0_i32_0 : i32, i32
  }
  func.func @transform_5(%arg0: i32) -> (i32, i32) {
    %c0_i32 = arith.constant 0 : i32
    %c0_i32_0 = arith.constant 0 : i32
    return %arg0, %c0_i32 : i32, i32
  }
}

</mosaic_0001>

<llo_original>
// kernel: tpu_custom_call.1
$region0: #{tpu_custom_call.1}
  #allocation0 [shape = 'u32[]', space=smem, size = 0x4, offset = 0x4, fixed_abs, tag = 'smem constant byte address 0x4 - core index']
  #allocation1 [shape = 'u32[72,128]{1,0:T(1,128)}', space=vmem, size = 0x9000, scoped, tag = 'internal scratch']
  %s0 = inlined_call_operand.hbm [shape: f32[4,128], index: 0, kind: input, shape index: {}]
  %s1 = inlined_call_operand.hbm [shape: f32[4,128], index: 1, kind: input, shape index: {}]
  %s2 = inlined_call_operand.vmem [shape: f32[1,128], index: 2, kind: input, shape index: {}]
  %s3 = inlined_call_operand.vmem [shape: f32[1,128], index: 3, kind: input, shape index: {}]
  %s4 = inlined_call_operand.hbm [shape: f32[128,128], index: 4, kind: input, shape index: {}]
  %s5 = inlined_call_operand.hbm [shape: f32[4,128], index: 5, kind: output, shape index: {}]
  %s6 = sld [smem:[#allocation0]]
  $region42: #{tpu_custom_call.1} parent=0
    _
  %s8 = ssub.s32 1, %s6
  %s9 = scalar_select 0, %s8, %s6
  $region1: #{tpu_custom_call.1} parent=0
    #allocation2 [shape = 'u8[2048]{0}', space=vmem, size = 0x800, scoped, tag = 'input window, operand 0, single buffered']
    #allocation3 [shape = 's32[1]{0}', space=sflag, size = 0x4, scoped, tag = 'scoped memory for tpu_custom_call.1']
    #allocation4 [shape = 's32[1]{0}', space=sflag, size = 0x4, scoped, tag = 'scoped memory for tpu_custom_call.1']
    #allocation5 [shape = 'u8[2048]{0}', space=vmem, size = 0x800, scoped, tag = 'input window, operand 1, single buffered']
    #allocation6 [shape = 's32[1]{0}', space=sflag, size = 0x4, scoped, tag = 'scoped memory for tpu_custom_call.1']
    #allocation7 [shape = 'u8[65536]{0}', space=vmem, size = 0x10000, scoped, tag = 'input window, operand 4, single buffered']
    #allocation8 [shape = 'u8[2048]{0}', space=vmem, size = 0x800, scoped, tag = 'output window, operand 0, single buffered']
    %10 = vsyncpa [#allocation3], 0
    %11 = vsyncpa [#allocation6], 0
    %12 = vsyncpa [#allocation4], 0
    // Predicated region
    $region2: #{tpu_custom_call.1} parent=1 // pred_check
      _
    $region3: #{tpu_custom_call.1} parent=1 // pred_check_branch
      %14 = sbr.rel (0) target = $region5
    $region4: #{tpu_custom_call.1} parent=1 // pred_region
      %16 = vsyncadd [#allocation3], 0
      %s18 = sshll.u32 %s0, 4
      %s19 = int_to_ptr.hbm [resolvable:$true] %s18
      %s20 = sshll.u32 [#allocation2], 4
      %s21 = int_to_ptr.vmem [resolvable:$true] %s20
      %23 = dma.hbm_to_vmem [thread:$0]  %s19, 64, %s21, [#allocation3]
    $region5: #{tpu_custom_call.1} parent=1 // pred_fallthru
      _
    // Predicated region
    $region6: #{tpu_custom_call.1} parent=1 // pred_check
      _
    $region7: #{tpu_custom_call.1} parent=1 // pred_check_branch
      %25 = sbr.rel (0) target = $region9
    $region8: #{tpu_custom_call.1} parent=1 // pred_region
      %27 = vsyncadd [#allocation6], 0
      %s29 = sshll.u32 %s1, 4
      %s30 = int_to_ptr.hbm [resolvable:$true] %s29
      %s31 = sshll.u32 [#allocation5], 4
      %s32 = int_to_ptr.vmem [resolvable:$true] %s31
      %34 = dma.hbm_to_vmem [thread:$0]  %s30, 64, %s32, [#allocation6]
    $region9: #{tpu_custom_call.1} parent=1 // pred_fallthru
      _
    // Predicated region
    $region10: #{tpu_custom_call.1} parent=1 // pred_check
      _
    $region11: #{tpu_custom_call.1} parent=1 // pred_check_branch
      %36 = sbr.rel (0) target = $region13
    $region12: #{tpu_custom_call.1} parent=1 // pred_region
      _
    $region13: #{tpu_custom_call.1} parent=1 // pred_fallthru
      _
    // Predicated region
    $region14: #{tpu_custom_call.1} parent=1 // pred_check
      _
    $region15: #{tpu_custom_call.1} parent=1 // pred_check_branch
      %38 = sbr.rel (0) target = $region17
    $region16: #{tpu_custom_call.1} parent=1 // pred_region
      _
    $region17: #{tpu_custom_call.1} parent=1 // pred_fallthru
      _
    // Predicated region
    $region18: #{tpu_custom_call.1} parent=1 // pred_check
      _
    $region19: #{tpu_custom_call.1} parent=1 // pred_check_branch
      %40 = sbr.rel (0) target = $region21
    $region20: #{tpu_custom_call.1} parent=1 // pred_region
      %42 = vsyncadd [#allocation6], 0
      %s43 = sshll.u32 %s4, 4
      %s44 = int_to_ptr.hbm [resolvable:$true] %s43
      %s45 = sshll.u32 [#allocation7], 4
      %s46 = int_to_ptr.vmem [resolvable:$true] %s45
      %51 = dma.hbm_to_vmem [thread:$0]  %s44, 2048, %s46, [#allocation6], 128, 128, 8
    $region21: #{tpu_custom_call.1} parent=1 // pred_fallthru
      _
    // Predicated region
    $region22: #{tpu_custom_call.1} parent=1 // pred_check
      _
    $region23: #{tpu_custom_call.1} parent=1 // pred_check_branch
      %53 = sbr.rel (0) target = $region25
    $region24: #{tpu_custom_call.1} parent=1 // pred_region
      %55 = dma.done [#allocation3], 64
    $region25: #{tpu_custom_call.1} parent=1 // pred_fallthru
      _
    // Predicated region
    $region26: #{tpu_custom_call.1} parent=1 // pred_check
      _
    $region27: #{tpu_custom_call.1} parent=1 // pred_check_branch
      %57 = sbr.rel (0) target = $region29
    $region28: #{tpu_custom_call.1} parent=1 // pred_region
      %59 = dma.done [#allocation6], 64
    $region29: #{tpu_custom_call.1} parent=1 // pred_fallthru
      _
    // Predicated region
    $region30: #{tpu_custom_call.1} parent=1 // pred_check
      _
    $region31: #{tpu_custom_call.1} parent=1 // pred_check_branch
      %61 = sbr.rel (0) target = $region33
    $region32: #{tpu_custom_call.1} parent=1 // pred_region
      %63 = dma.done [#allocation6], 2048
    $region33: #{tpu_custom_call.1} parent=1 // pred_fallthru
      _
    %v64 = vld [vmem:[#allocation2] sm:$0xf]
    %v65 = vld [vmem:[#allocation5] sm:$0xf]
    %v66 = vadd.f32 %v64, %v65
    %v67 = vld [vmem:[#allocation7] sm:$0xff]
    %v68 = vld [vmem:[#allocation7 + $0x8] sm:$0xff]
    %v69 = vld [vmem:[#allocation7 + $0x10] sm:$0xff]
    %v70 = vld [vmem:[#allocation7 + $0x18] sm:$0xff]
    %v71 = vld [vmem:[#allocation7 + $0x20] sm:$0xff]
    %v72 = vld [vmem:[#allocation7 + $0x28] sm:$0xff]
    %v73 = vld [vmem:[#allocation7 + $0x30] sm:$0xff]
    %v74 = vld [vmem:[#allocation7 + $0x38] sm:$0xff]
    %v75 = vld [vmem:[#allocation7 + $0x40] sm:$0xff]
    %v76 = vld [vmem:[#allocation7 + $0x48] sm:$0xff]
    %v77 = vld [vmem:[#allocation7 + $0x50] sm:$0xff]
    %v78 = vld [vmem:[#allocation7 + $0x58] sm:$0xff]
    %v79 = vld [vmem:[#allocation7 + $0x60] sm:$0xff]
    %v80 = vld [vmem:[#allocation7 + $0x68] sm:$0xff]
    %v81 = vld [vmem:[#allocation7 + $0x70] sm:$0xff]
    %v82 = vld [vmem:[#allocation7 + $0x78] sm:$0xff]
    %v83 = vand.u32 %v82, 4294901760
    %84 = vmatpush.msra.mxu0 %v83
    %v85 = vand.u32 %v81, 4294901760
    %86 = vmatpush.msra.mxu0 %v85
    %v87 = vand.u32 %v80, 4294901760
    %88 = vmatpush.msra.mxu0 %v87
    %v89 = vand.u32 %v79, 4294901760
    %90 = vmatpush.msra.mxu0 %v89
    %v91 = vand.u32 %v78, 4294901760
    %92 = vmatpush.msra.mxu0 %v91
    %v93 = vand.u32 %v77, 4294901760
    %94 = vmatpush.msra.mxu0 %v93
    %v95 = vand.u32 %v76, 4294901760
    %96 = vmatpush.msra.mxu0 %v95
    %v97 = vand.u32 %v75, 4294901760
    %98 = vmatpush.msra.mxu0 %v97
    %v99 = vand.u32 %v74, 4294901760
    %100 = vmatpush.msra.mxu0 %v99
    %v101 = vand.u32 %v73, 4294901760
    %102 = vmatpush.msra.mxu0 %v101
    %v103 = vand.u32 %v72, 4294901760
    %104 = vmatpush.msra.mxu0 %v103
    %v105 = vand.u32 %v71, 4294901760
    %106 = vmatpush.msra.mxu0 %v105
    %v107 = vand.u32 %v70, 4294901760
    %108 = vmatpush.msra.mxu0 %v107
    %v109 = vand.u32 %v69, 4294901760
    %110 = vmatpush.msra.mxu0 %v109
    %v111 = vand.u32 %v68, 4294901760
    %112 = vmatpush.msra.mxu0 %v111
    %v113 = vand.u32 %v67, 4294901760
    %114 = vmatpush.msra.mxu0 %v113
    %v115 = vand.u32 %v66, 4294901760
    %v116 = vsub.f32 %v66, %v115
    %v117 = vand.u32 %v116, 4294901760
    %v118 = vsub.f32 %v116, %v117
    %v119 = vand.u32 %v118, 4294901760
    %120 = vmatmul.f32.gmra.mxu0 %v119
    %v121 = vpop.f32.mrf.mxu0
    %v122 = vadd.f32 0.0, %v121
    %123 = vdwg.mxu0
    %v124 = vand.u32 %v82, 4294901760
    %v125 = vsub.f32 %v82, %v124
    %v126 = vand.u32 %v125, 4294901760
    %v127 = vsub.f32 %v125, %v126
    %v128 = vand.u32 %v127, 4294901760
    %129 = vmatpush.msra.mxu0 %v128
    %v130 = vand.u32 %v81, 4294901760
    %v131 = vsub.f32 %v81, %v130
    %v132 = vand.u32 %v131, 4294901760
    %v133 = vsub.f32 %v131, %v132
    %v134 = vand.u32 %v133, 4294901760
    %135 = vmatpush.msra.mxu0 %v134
    %v136 = vand.u32 %v80, 4294901760
    %v137 = vsub.f32 %v80, %v136
    %v138 = vand.u32 %v137, 4294901760
    %v139 = vsub.f32 %v137, %v138
    %v140 = vand.u32 %v139, 4294901760
    %141 = vmatpush.msra.mxu0 %v140
    %v142 = vand.u32 %v79, 4294901760
    %v143 = vsub.f32 %v79, %v142
    %v144 = vand.u32 %v143, 4294901760
    %v145 = vsub.f32 %v143, %v144
    %v146 = vand.u32 %v145, 4294901760
    %147 = vmatpush.msra.mxu0 %v146
    %v148 = vand.u32 %v78, 4294901760
    %v149 = vsub.f32 %v78, %v148
    %v150 = vand.u32 %v149, 4294901760
    %v151 = vsub.f32 %v149, %v150
    %v152 = vand.u32 %v151, 4294901760
    %153 = vmatpush.msra.mxu0 %v152
    %v154 = vand.u32 %v77, 4294901760
    %v155 = vsub.f32 %v77, %v154
    %v156 = vand.u32 %v155, 4294901760
    %v157 = vsub.f32 %v155, %v156
    %v158 = vand.u32 %v157, 4294901760
    %159 = vmatpush.msra.mxu0 %v158
    %v160 = vand.u32 %v76, 4294901760
    %v161 = vsub.f32 %v76, %v160
    %v162 = vand.u32 %v161, 4294901760
    %v163 = vsub.f32 %v161, %v162
    %v164 = vand.u32 %v163, 4294901760
    %165 = vmatpush.msra.mxu0 %v164
    %v166 = vand.u32 %v75, 4294901760
    %v167 = vsub.f32 %v75, %v166
    %v168 = vand.u32 %v167, 4294901760
    %v169 = vsub.f32 %v167, %v168
    %v170 = vand.u32 %v169, 4294901760
    %171 = vmatpush.msra.mxu0 %v170
    %v172 = vand.u32 %v74, 4294901760
    %v173 = vsub.f32 %v74, %v172
    %v174 = vand.u32 %v173, 4294901760
    %v175 = vsub.f32 %v173, %v174
    %v176 = vand.u32 %v175, 4294901760
    %177 = vmatpush.msra.mxu0 %v176
    %v178 = vand.u32 %v73, 4294901760
    %v179 = vsub.f32 %v73, %v178
    %v180 = vand.u32 %v179, 4294901760
    %v181 = vsub.f32 %v179, %v180
    %v182 = vand.u32 %v181, 4294901760
    %183 = vmatpush.msra.mxu0 %v182
    %v184 = vand.u32 %v72, 4294901760
    %v185 = vsub.f32 %v72, %v184
    %v186 = vand.u32 %v185, 4294901760
    %v187 = vsub.f32 %v185, %v186
    %v188 = vand.u32 %v187, 4294901760
    %189 = vmatpush.msra.mxu0 %v188
    %v190 = vand.u32 %v71, 4294901760
    %v191 = vsub.f32 %v71, %v190
    %v192 = vand.u32 %v191, 4294901760
    %v193 = vsub.f32 %v191, %v192
    %v194 = vand.u32 %v193, 4294901760
    %195 = vmatpush.msra.mxu0 %v194
    %v196 = vand.u32 %v70, 4294901760
    %v197 = vsub.f32 %v70, %v196
    %v198 = vand.u32 %v197, 4294901760
    %v199 = vsub.f32 %v197, %v198
    %v200 = vand.u32 %v199, 4294901760
    %201 = vmatpush.msra.mxu0 %v200
    %v202 = vand.u32 %v69, 4294901760
    %v203 = vsub.f32 %v69, %v202
    %v204 = vand.u32 %v203, 4294901760
    %v205 = vsub.f32 %v203, %v204
    %v206 = vand.u32 %v205, 4294901760
    %207 = vmatpush.msra.mxu0 %v206
    %v208 = vand.u32 %v68, 4294901760
    %v209 = vsub.f32 %v68, %v208
    %v210 = vand.u32 %v209, 4294901760
    %v211 = vsub.f32 %v209, %v210
    %v212 = vand.u32 %v211, 4294901760
    %213 = vmatpush.msra.mxu0 %v212
    %v214 = vand.u32 %v67, 4294901760
    %v215 = vsub.f32 %v67, %v214
    %v216 = vand.u32 %v215, 4294901760
    %v217 = vsub.f32 %v215, %v216
    %v218 = vand.u32 %v217, 4294901760
    %219 = vmatpush.msra.mxu0 %v218
    %v220 = vand.u32 %v66, 4294901760
    %221 = vmatmul.f32.gmra.mxu0 %v220
    %v222 = vpop.f32.mrf.mxu0
    %v223 = vadd.f32 %v122, %v222
    %224 = vdwg.mxu0
    %v225 = vand.u32 %v82, 4294901760
    %v226 = vsub.f32 %v82, %v225
    %227 = vmatpush.msra.mxu0 %v226
    %v228 = vand.u32 %v81, 4294901760
    %v229 = vsub.f32 %v81, %v228
    %230 = vmatpush.msra.mxu0 %v229
    %v231 = vand.u32 %v80, 4294901760
    %v232 = vsub.f32 %v80, %v231
    %233 = vmatpush.msra.mxu0 %v232
    %v234 = vand.u32 %v79, 4294901760
    %v235 = vsub.f32 %v79, %v234
    %236 = vmatpush.msra.mxu0 %v235
    %v237 = vand.u32 %v78, 4294901760
    %v238 = vsub.f32 %v78, %v237
    %239 = vmatpush.msra.mxu0 %v238
    %v240 = vand.u32 %v77, 4294901760
    %v241 = vsub.f32 %v77, %v240
    %242 = vmatpush.msra.mxu0 %v241
    %v243 = vand.u32 %v76, 4294901760
    %v244 = vsub.f32 %v76, %v243
    %245 = vmatpush.msra.mxu0 %v244
    %v246 = vand.u32 %v75, 4294901760
    %v247 = vsub.f32 %v75, %v246
    %248 = vmatpush.msra.mxu0 %v247
    %v249 = vand.u32 %v74, 4294901760
    %v250 = vsub.f32 %v74, %v249
    %251 = vmatpush.msra.mxu0 %v250
    %v252 = vand.u32 %v73, 4294901760
    %v253 = vsub.f32 %v73, %v252
    %254 = vmatpush.msra.mxu0 %v253
    %v255 = vand.u32 %v72, 4294901760
    %v256 = vsub.f32 %v72, %v255
    %257 = vmatpush.msra.mxu0 %v256
    %v258 = vand.u32 %v71, 4294901760
    %v259 = vsub.f32 %v71, %v258
    %260 = vmatpush.msra.mxu0 %v259
    %v261 = vand.u32 %v70, 4294901760
    %v262 = vsub.f32 %v70, %v261
    %263 = vmatpush.msra.mxu0 %v262
    %v264 = vand.u32 %v69, 4294901760
    %v265 = vsub.f32 %v69, %v264
    %266 = vmatpush.msra.mxu0 %v265
    %v267 = vand.u32 %v68, 4294901760
    %v268 = vsub.f32 %v68, %v267
    %269 = vmatpush.msra.mxu0 %v268
    %v270 = vand.u32 %v67, 4294901760
    %v271 = vsub.f32 %v67, %v270
    %272 = vmatpush.msra.mxu0 %v271
    %v273 = vand.u32 %v66, 4294901760
    %v274 = vsub.f32 %v66, %v273
    %275 = vmatmul.f32.gmra.mxu0 %v274
    %v276 = vpop.f32.mrf.mxu0
    %v277 = vadd.f32 %v223, %v276
    %278 = vdwg.mxu0
    %v279 = vand.u32 %v82, 4294901760
    %280 = vmatpush.msra.mxu0 %v279
    %v281 = vand.u32 %v81, 4294901760
    %282 = vmatpush.msra.mxu0 %v281
    %v283 = vand.u32 %v80, 4294901760
    %284 = vmatpush.msra.mxu0 %v283
    %v285 = vand.u32 %v79, 4294901760
    %286 = vmatpush.msra.mxu0 %v285
    %v287 = vand.u32 %v78, 4294901760
    %288 = vmatpush.msra.mxu0 %v287
    %v289 = vand.u32 %v77, 4294901760
    %290 = vmatpush.msra.mxu0 %v289
    %v291 = vand.u32 %v76, 4294901760
    %292 = vmatpush.msra.mxu0 %v291
    %v293 = vand.u32 %v75, 4294901760
    %294 = vmatpush.msra.mxu0 %v293
    %v295 = vand.u32 %v74, 4294901760
    %296 = vmatpush.msra.mxu0 %v295
    %v297 = vand.u32 %v73, 4294901760
    %298 = vmatpush.msra.mxu0 %v297
    %v299 = vand.u32 %v72, 4294901760
    %300 = vmatpush.msra.mxu0 %v299
    %v301 = vand.u32 %v71, 4294901760
    %302 = vmatpush.msra.mxu0 %v301
    %v303 = vand.u32 %v70, 4294901760
    %304 = vmatpush.msra.mxu0 %v303
    %v305 = vand.u32 %v69, 4294901760
    %306 = vmatpush.msra.mxu0 %v305
    %v307 = vand.u32 %v68, 4294901760
    %308 = vmatpush.msra.mxu0 %v307
    %v309 = vand.u32 %v67, 4294901760
    %310 = vmatpush.msra.mxu0 %v309
    %v311 = vand.u32 %v66, 4294901760
    %v312 = vsub.f32 %v66, %v311
    %v313 = vand.u32 %v312, 4294901760
    %314 = vmatmul.f32.gmra.mxu0 %v313
    %v315 = vpop.f32.mrf.mxu0
    %v316 = vadd.f32 %v277, %v315
    %317 = vdwg.mxu0
    %v318 = vand.u32 %v82, 4294901760
    %v319 = vsub.f32 %v82, %v318
    %v320 = vand.u32 %v319, 4294901760
    %321 = vmatpush.msra.mxu0 %v320
    %v322 = vand.u32 %v81, 4294901760
    %v323 = vsub.f32 %v81, %v322
    %v324 = vand.u32 %v323, 4294901760
    %325 = vmatpush.msra.mxu0 %v324
    %v326 = vand.u32 %v80, 4294901760
    %v327 = vsub.f32 %v80, %v326
    %v328 = vand.u32 %v327, 4294901760
    %329 = vmatpush.msra.mxu0 %v328
    %v330 = vand.u32 %v79, 4294901760
    %v331 = vsub.f32 %v79, %v330
    %v332 = vand.u32 %v331, 4294901760
    %333 = vmatpush.msra.mxu0 %v332
    %v334 = vand.u32 %v78, 4294901760
    %v335 = vsub.f32 %v78, %v334
    %v336 = vand.u32 %v335, 4294901760
    %337 = vmatpush.msra.mxu0 %v336
    %v338 = vand.u32 %v77, 4294901760
    %v339 = vsub.f32 %v77, %v338
    %v340 = vand.u32 %v339, 4294901760
    %341 = vmatpush.msra.mxu0 %v340
    %v342 = vand.u32 %v76, 4294901760
    %v343 = vsub.f32 %v76, %v342
    %v344 = vand.u32 %v343, 4294901760
    %345 = vmatpush.msra.mxu0 %v344
    %v346 = vand.u32 %v75, 4294901760
    %v347 = vsub.f32 %v75, %v346
    %v348 = vand.u32 %v347, 4294901760
    %349 = vmatpush.msra.mxu0 %v348
    %v350 = vand.u32 %v74, 4294901760
    %v351 = vsub.f32 %v74, %v350
    %v352 = vand.u32 %v351, 4294901760
    %353 = vmatpush.msra.mxu0 %v352
    %v354 = vand.u32 %v73, 4294901760
    %v355 = vsub.f32 %v73, %v354
    %v356 = vand.u32 %v355, 4294901760
    %357 = vmatpush.msra.mxu0 %v356
    %v358 = vand.u32 %v72, 4294901760
    %v359 = vsub.f32 %v72, %v358
    %v360 = vand.u32 %v359, 4294901760
    %361 = vmatpush.msra.mxu0 %v360
    %v362 = vand.u32 %v71, 4294901760
    %v363 = vsub.f32 %v71, %v362
    %v364 = vand.u32 %v363, 4294901760
    %365 = vmatpush.msra.mxu0 %v364
    %v366 = vand.u32 %v70, 4294901760
    %v367 = vsub.f32 %v70, %v366
    %v368 = vand.u32 %v367, 4294901760
    %369 = vmatpush.msra.mxu0 %v368
    %v370 = vand.u32 %v69, 4294901760
    %v371 = vsub.f32 %v69, %v370
    %v372 = vand.u32 %v371, 4294901760
    %373 = vmatpush.msra.mxu0 %v372
    %v374 = vand.u32 %v68, 4294901760
    %v375 = vsub.f32 %v68, %v374
    %v376 = vand.u32 %v375, 4294901760
    %377 = vmatpush.msra.mxu0 %v376
    %v378 = vand.u32 %v67, 4294901760
    %v379 = vsub.f32 %v67, %v378
    %v380 = vand.u32 %v379, 4294901760
    %381 = vmatpush.msra.mxu0 %v380
    %v382 = vand.u32 %v66, 4294901760
    %383 = vmatmul.f32.gmra.mxu0 %v382
    %v384 = vpop.f32.mrf.mxu0
    %v385 = vadd.f32 %v316, %v384
    %386 = vdwg.mxu0
    %v387 = vand.u32 %v82, 4294901760
    %388 = vmatpush.msra.mxu0 %v387
    %v389 = vand.u32 %v81, 4294901760
    %390 = vmatpush.msra.mxu0 %v389
    %v391 = vand.u32 %v80, 4294901760
    %392 = vmatpush.msra.mxu0 %v391
    %v393 = vand.u32 %v79, 4294901760
    %394 = vmatpush.msra.mxu0 %v393
    %v395 = vand.u32 %v78, 4294901760
    %396 = vmatpush.msra.mxu0 %v395
    %v397 = vand.u32 %v77, 4294901760
    %398 = vmatpush.msra.mxu0 %v397
    %v399 = vand.u32 %v76, 4294901760
    %400 = vmatpush.msra.mxu0 %v399
    %v401 = vand.u32 %v75, 4294901760
    %402 = vmatpush.msra.mxu0 %v401
    %v403 = vand.u32 %v74, 4294901760
    %404 = vmatpush.msra.mxu0 %v403
    %v405 = vand.u32 %v73, 4294901760
    %406 = vmatpush.msra.mxu0 %v405
    %v407 = vand.u32 %v72, 4294901760
    %408 = vmatpush.msra.mxu0 %v407
    %v409 = vand.u32 %v71, 4294901760
    %410 = vmatpush.msra.mxu0 %v409
    %v411 = vand.u32 %v70, 4294901760
    %412 = vmatpush.msra.mxu0 %v411
    %v413 = vand.u32 %v69, 4294901760
    %414 = vmatpush.msra.mxu0 %v413
    %v415 = vand.u32 %v68, 4294901760
    %416 = vmatpush.msra.mxu0 %v415
    %v417 = vand.u32 %v67, 4294901760
    %418 = vmatpush.msra.mxu0 %v417
    %v419 = vand.u32 %v66, 4294901760
    %420 = vmatmul.f32.gmra.mxu0 %v419
    %v421 = vpop.f32.mrf.mxu0
    %v422 = vadd.f32 %v385, %v421
    %423 = vdwg.mxu0
    %v424 = vmul.f32 %v422, 0.03125
    %v425 = vsub.f32 %v66, %v424
    %v426 = vmul.f32 %v425, %v425
    %v427 = vand.u32 %v82, 4294901760
    %428 = vmatpush.msra.mxu0 %v427
    %v429 = vand.u32 %v81, 4294901760
    %430 = vmatpush.msra.mxu0 %v429
    %v431 = vand.u32 %v80, 4294901760
    %432 = vmatpush.msra.mxu0 %v431
    %v433 = vand.u32 %v79, 4294901760
    %434 = vmatpush.msra.mxu0 %v433
    %v435 = vand.u32 %v78, 4294901760
    %436 = vmatpush.msra.mxu0 %v435
    %v437 = vand.u32 %v77, 4294901760
    %438 = vmatpush.msra.mxu0 %v437
    %v439 = vand.u32 %v76, 4294901760
    %440 = vmatpush.msra.mxu0 %v439
    %v441 = vand.u32 %v75, 4294901760
    %442 = vmatpush.msra.mxu0 %v441
    %v443 = vand.u32 %v74, 4294901760
    %444 = vmatpush.msra.mxu0 %v443
    %v445 = vand.u32 %v73, 4294901760
    %446 = vmatpush.msra.mxu0 %v445
    %v447 = vand.u32 %v72, 4294901760
    %448 = vmatpush.msra.mxu0 %v447
    %v449 = vand.u32 %v71, 4294901760
    %450 = vmatpush.msra.mxu0 %v449
    %v451 = vand.u32 %v70, 4294901760
    %452 = vmatpush.msra.mxu0 %v451
    %v453 = vand.u32 %v69, 4294901760
    %454 = vmatpush.msra.mxu0 %v453
    %v455 = vand.u32 %v68, 4294901760
    %456 = vmatpush.msra.mxu0 %v455
    %v457 = vand.u32 %v67, 4294901760
    %458 = vmatpush.msra.mxu0 %v457
    %v459 = vand.u32 %v426, 4294901760
    %v460 = vsub.f32 %v426, %v459
    %v461 = vand.u32 %v460, 4294901760
    %v462 = vsub.f32 %v460, %v461
    %v463 = vand.u32 %v462, 4294901760
    %464 = vmatmul.f32.gmra.mxu0 %v463
    %v465 = vpop.f32.mrf.mxu0
    %v466 = vadd.f32 0.0, %v465
    %467 = vdwg.mxu0
    %v468 = vand.u32 %v82, 4294901760
    %v469 = vsub.f32 %v82, %v468
    %v470 = vand.u32 %v469, 4294901760
    %v471 = vsub.f32 %v469, %v470
    %v472 = vand.u32 %v471, 4294901760
    %473 = vmatpush.msra.mxu0 %v472
    %v474 = vand.u32 %v81, 4294901760
    %v475 = vsub.f32 %v81, %v474
    %v476 = vand.u32 %v475, 4294901760
    %v477 = vsub.f32 %v475, %v476
    %v478 = vand.u32 %v477, 4294901760
    %479 = vmatpush.msra.mxu0 %v478
    %v480 = vand.u32 %v80, 4294901760
    %v481 = vsub.f32 %v80, %v480
    %v482 = vand.u32 %v481, 4294901760
    %v483 = vsub.f32 %v481, %v482
    %v484 = vand.u32 %v483, 4294901760
    %485 = vmatpush.msra.mxu0 %v484
    %v486 = vand.u32 %v79, 4294901760
    %v487 = vsub.f32 %v79, %v486
    %v488 = vand.u32 %v487, 4294901760
    %v489 = vsub.f32 %v487, %v488
    %v490 = vand.u32 %v489, 4294901760
    %491 = vmatpush.msra.mxu0 %v490
    %v492 = vand.u32 %v78, 4294901760
    %v493 = vsub.f32 %v78, %v492
    %v494 = vand.u32 %v493, 4294901760
    %v495 = vsub.f32 %v493, %v494
    %v496 = vand.u32 %v495, 4294901760
    %497 = vmatpush.msra.mxu0 %v496
    %v498 = vand.u32 %v77, 4294901760
    %v499 = vsub.f32 %v77, %v498
    %v500 = vand.u32 %v499, 4294901760
    %v501 = vsub.f32 %v499, %v500
    %v502 = vand.u32 %v501, 4294901760
    %503 = vmatpush.msra.mxu0 %v502
    %v504 = vand.u32 %v76, 4294901760
    %v505 = vsub.f32 %v76, %v504
    %v506 = vand.u32 %v505, 4294901760
    %v507 = vsub.f32 %v505, %v506
    %v508 = vand.u32 %v507, 4294901760
    %509 = vmatpush.msra.mxu0 %v508
    %v510 = vand.u32 %v75, 4294901760
    %v511 = vsub.f32 %v75, %v510
    %v512 = vand.u32 %v511, 4294901760
    %v513 = vsub.f32 %v511, %v512
    %v514 = vand.u32 %v513, 4294901760
    %515 = vmatpush.msra.mxu0 %v514
    %v516 = vand.u32 %v74, 4294901760
    %v517 = vsub.f32 %v74, %v516
    %v518 = vand.u32 %v517, 4294901760
    %v519 = vsub.f32 %v517, %v518
    %v520 = vand.u32 %v519, 4294901760
    %521 = vmatpush.msra.mxu0 %v520
    %v522 = vand.u32 %v73, 4294901760
    %v523 = vsub.f32 %v73, %v522
    %v524 = vand.u32 %v523, 4294901760
    %v525 = vsub.f32 %v523, %v524
    %v526 = vand.u32 %v525, 4294901760
    %527 = vmatpush.msra.mxu0 %v526
    %v528 = vand.u32 %v72, 4294901760
    %v529 = vsub.f32 %v72, %v528
    %v530 = vand.u32 %v529, 4294901760
    %v531 = vsub.f32 %v529, %v530
    %v532 = vand.u32 %v531, 4294901760
    %533 = vmatpush.msra.mxu0 %v532
    %v534 = vand.u32 %v71, 4294901760
    %v535 = vsub.f32 %v71, %v534
    %v536 = vand.u32 %v535, 4294901760
    %v537 = vsub.f32 %v535, %v536
    %v538 = vand.u32 %v537, 4294901760
    %539 = vmatpush.msra.mxu0 %v538
    %v540 = vand.u32 %v70, 4294901760
    %v541 = vsub.f32 %v70, %v540
    %v542 = vand.u32 %v541, 4294901760
    %v543 = vsub.f32 %v541, %v542
    %v544 = vand.u32 %v543, 4294901760
    %545 = vmatpush.msra.mxu0 %v544
    %v546 = vand.u32 %v69, 4294901760
    %v547 = vsub.f32 %v69, %v546
    %v548 = vand.u32 %v547, 4294901760
    %v549 = vsub.f32 %v547, %v548
    %v550 = vand.u32 %v549, 4294901760
    %551 = vmatpush.msra.mxu0 %v550
    %v552 = vand.u32 %v68, 4294901760
    %v553 = vsub.f32 %v68, %v552
    %v554 = vand.u32 %v553, 4294901760
    %v555 = vsub.f32 %v553, %v554
    %v556 = vand.u32 %v555, 4294901760
    %557 = vmatpush.msra.mxu0 %v556
    %v558 = vand.u32 %v67, 4294901760
    %v559 = vsub.f32 %v67, %v558
    %v560 = vand.u32 %v559, 4294901760
    %v561 = vsub.f32 %v559, %v560
    %v562 = vand.u32 %v561, 4294901760
    %563 = vmatpush.msra.mxu0 %v562
    %v564 = vand.u32 %v426, 4294901760
    %565 = vmatmul.f32.gmra.mxu0 %v564
    %v566 = vpop.f32.mrf.mxu0
    %v567 = vadd.f32 %v466, %v566
    %568 = vdwg.mxu0
    %v569 = vand.u32 %v82, 4294901760
    %v570 = vsub.f32 %v82, %v569
    %571 = vmatpush.msra.mxu0 %v570
    %v572 = vand.u32 %v81, 4294901760
    %v573 = vsub.f32 %v81, %v572
    %574 = vmatpush.msra.mxu0 %v573
    %v575 = vand.u32 %v80, 4294901760
    %v576 = vsub.f32 %v80, %v575
    %577 = vmatpush.msra.mxu0 %v576
    %v578 = vand.u32 %v79, 4294901760
    %v579 = vsub.f32 %v79, %v578
    %580 = vmatpush.msra.mxu0 %v579
    %v581 = vand.u32 %v78, 4294901760
    %v582 = vsub.f32 %v78, %v581
    %583 = vmatpush.msra.mxu0 %v582
    %v584 = vand.u32 %v77, 4294901760
    %v585 = vsub.f32 %v77, %v584
    %586 = vmatpush.msra.mxu0 %v585
    %v587 = vand.u32 %v76, 4294901760
    %v588 = vsub.f32 %v76, %v587
    %589 = vmatpush.msra.mxu0 %v588
    %v590 = vand.u32 %v75, 4294901760
    %v591 = vsub.f32 %v75, %v590
    %592 = vmatpush.msra.mxu0 %v591
    %v593 = vand.u32 %v74, 4294901760
    %v594 = vsub.f32 %v74, %v593
    %595 = vmatpush.msra.mxu0 %v594
    %v596 = vand.u32 %v73, 4294901760
    %v597 = vsub.f32 %v73, %v596
    %598 = vmatpush.msra.mxu0 %v597
    %v599 = vand.u32 %v72, 4294901760
    %v600 = vsub.f32 %v72, %v599
    %601 = vmatpush.msra.mxu0 %v600
    %v602 = vand.u32 %v71, 4294901760
    %v603 = vsub.f32 %v71, %v602
    %604 = vmatpush.msra.mxu0 %v603
    %v605 = vand.u32 %v70, 4294901760
    %v606 = vsub.f32 %v70, %v605
    %607 = vmatpush.msra.mxu0 %v606
    %v608 = vand.u32 %v69, 4294901760
    %v609 = vsub.f32 %v69, %v608
    %610 = vmatpush.msra.mxu0 %v609
    %v611 = vand.u32 %v68, 4294901760
    %v612 = vsub.f32 %v68, %v611
    %613 = vmatpush.msra.mxu0 %v612
    %v614 = vand.u32 %v67, 4294901760
    %v615 = vsub.f32 %v67, %v614
    %616 = vmatpush.msra.mxu0 %v615
    %v617 = vand.u32 %v426, 4294901760
    %v618 = vsub.f32 %v426, %v617
    %619 = vmatmul.f32.gmra.mxu0 %v618
    %v620 = vpop.f32.mrf.mxu0
    %v621 = vadd.f32 %v567, %v620
    %622 = vdwg.mxu0
    %v623 = vand.u32 %v82, 4294901760
    %624 = vmatpush.msra.mxu0 %v623
    %v625 = vand.u32 %v81, 4294901760
    %626 = vmatpush.msra.mxu0 %v625
    %v627 = vand.u32 %v80, 4294901760
    %628 = vmatpush.msra.mxu0 %v627
    %v629 = vand.u32 %v79, 4294901760
    %630 = vmatpush.msra.mxu0 %v629
    %v631 = vand.u32 %v78, 4294901760
    %632 = vmatpush.msra.mxu0 %v631
    %v633 = vand.u32 %v77, 4294901760
    %634 = vmatpush.msra.mxu0 %v633
    %v635 = vand.u32 %v76, 4294901760
    %636 = vmatpush.msra.mxu0 %v635
    %v637 = vand.u32 %v75, 4294901760
    %638 = vmatpush.msra.mxu0 %v637
    %v639 = vand.u32 %v74, 4294901760
    %640 = vmatpush.msra.mxu0 %v639
    %v641 = vand.u32 %v73, 4294901760
    %642 = vmatpush.msra.mxu0 %v641
    %v643 = vand.u32 %v72, 4294901760
    %644 = vmatpush.msra.mxu0 %v643
    %v645 = vand.u32 %v71, 4294901760
    %646 = vmatpush.msra.mxu0 %v645
    %v647 = vand.u32 %v70, 4294901760
    %648 = vmatpush.msra.mxu0 %v647
    %v649 = vand.u32 %v69, 4294901760
    %650 = vmatpush.msra.mxu0 %v649
    %v651 = vand.u32 %v68, 4294901760
    %652 = vmatpush.msra.mxu0 %v651
    %v653 = vand.u32 %v67, 4294901760
    %654 = vmatpush.msra.mxu0 %v653
    %v655 = vand.u32 %v426, 4294901760
    %v656 = vsub.f32 %v426, %v655
    %v657 = vand.u32 %v656, 4294901760
    %658 = vmatmul.f32.gmra.mxu0 %v657
    %v659 = vpop.f32.mrf.mxu0
    %v660 = vadd.f32 %v621, %v659
    %661 = vdwg.mxu0
    %v662 = vand.u32 %v82, 4294901760
    %v663 = vsub.f32 %v82, %v662
    %v664 = vand.u32 %v663, 4294901760
    %665 = vmatpush.msra.mxu0 %v664
    %v666 = vand.u32 %v81, 4294901760
    %v667 = vsub.f32 %v81, %v666
    %v668 = vand.u32 %v667, 4294901760
    %669 = vmatpush.msra.mxu0 %v668
    %v670 = vand.u32 %v80, 4294901760
    %v671 = vsub.f32 %v80, %v670
    %v672 = vand.u32 %v671, 4294901760
    %673 = vmatpush.msra.mxu0 %v672
    %v674 = vand.u32 %v79, 4294901760
    %v675 = vsub.f32 %v79, %v674
    %v676 = vand.u32 %v675, 4294901760
    %677 = vmatpush.msra.mxu0 %v676
    %v678 = vand.u32 %v78, 4294901760
    %v679 = vsub.f32 %v78, %v678
    %v680 = vand.u32 %v679, 4294901760
    %681 = vmatpush.msra.mxu0 %v680
    %v682 = vand.u32 %v77, 4294901760
    %v683 = vsub.f32 %v77, %v682
    %v684 = vand.u32 %v683, 4294901760
    %685 = vmatpush.msra.mxu0 %v684
    %v686 = vand.u32 %v76, 4294901760
    %v687 = vsub.f32 %v76, %v686
    %v688 = vand.u32 %v687, 4294901760
    %689 = vmatpush.msra.mxu0 %v688
    %v690 = vand.u32 %v75, 4294901760
    %v691 = vsub.f32 %v75, %v690
    %v692 = vand.u32 %v691, 4294901760
    %693 = vmatpush.msra.mxu0 %v692
    %v694 = vand.u32 %v74, 4294901760
    %v695 = vsub.f32 %v74, %v694
    %v696 = vand.u32 %v695, 4294901760
    %697 = vmatpush.msra.mxu0 %v696
    %v698 = vand.u32 %v73, 4294901760
    %v699 = vsub.f32 %v73, %v698
    %v700 = vand.u32 %v699, 4294901760
    %701 = vmatpush.msra.mxu0 %v700
    %v702 = vand.u32 %v72, 4294901760
    %v703 = vsub.f32 %v72, %v702
    %v704 = vand.u32 %v703, 4294901760
    %705 = vmatpush.msra.mxu0 %v704
    %v706 = vand.u32 %v71, 4294901760
    %v707 = vsub.f32 %v71, %v706
    %v708 = vand.u32 %v707, 4294901760
    %709 = vmatpush.msra.mxu0 %v708
    %v710 = vand.u32 %v70, 4294901760
    %v711 = vsub.f32 %v70, %v710
    %v712 = vand.u32 %v711, 4294901760
    %713 = vmatpush.msra.mxu0 %v712
    %v714 = vand.u32 %v69, 4294901760
    %v715 = vsub.f32 %v69, %v714
    %v716 = vand.u32 %v715, 4294901760
    %717 = vmatpush.msra.mxu0 %v716
    %v718 = vand.u32 %v68, 4294901760
    %v719 = vsub.f32 %v68, %v718
    %v720 = vand.u32 %v719, 4294901760
    %721 = vmatpush.msra.mxu0 %v720
    %v722 = vand.u32 %v67, 4294901760
    %v723 = vsub.f32 %v67, %v722
    %v724 = vand.u32 %v723, 4294901760
    %725 = vmatpush.msra.mxu0 %v724
    %v726 = vand.u32 %v426, 4294901760
    %727 = vmatmul.f32.gmra.mxu0 %v726
    %v728 = vpop.f32.mrf.mxu0
    %v729 = vadd.f32 %v660, %v728
    %730 = vdwg.mxu0
    %v731 = vand.u32 %v82, 4294901760
    %732 = vmatpush.msra.mxu0 %v731
    %v733 = vand.u32 %v81, 4294901760
    %734 = vmatpush.msra.mxu0 %v733
    %v735 = vand.u32 %v80, 4294901760
    %736 = vmatpush.msra.mxu0 %v735
    %v737 = vand.u32 %v79, 4294901760
    %738 = vmatpush.msra.mxu0 %v737
    %v739 = vand.u32 %v78, 4294901760
    %740 = vmatpush.msra.mxu0 %v739
    %v741 = vand.u32 %v77, 4294901760
    %742 = vmatpush.msra.mxu0 %v741
    %v743 = vand.u32 %v76, 4294901760
    %744 = vmatpush.msra.mxu0 %v743
    %v745 = vand.u32 %v75, 4294901760
    %746 = vmatpush.msra.mxu0 %v745
    %v747 = vand.u32 %v74, 4294901760
    %748 = vmatpush.msra.mxu0 %v747
    %v749 = vand.u32 %v73, 4294901760
    %750 = vmatpush.msra.mxu0 %v749
    %v751 = vand.u32 %v72, 4294901760
    %752 = vmatpush.msra.mxu0 %v751
    %v753 = vand.u32 %v71, 4294901760
    %754 = vmatpush.msra.mxu0 %v753
    %v755 = vand.u32 %v70, 4294901760
    %756 = vmatpush.msra.mxu0 %v755
    %v757 = vand.u32 %v69, 4294901760
    %758 = vmatpush.msra.mxu0 %v757
    %v759 = vand.u32 %v68, 4294901760
    %760 = vmatpush.msra.mxu0 %v759
    %v761 = vand.u32 %v67, 4294901760
    %762 = vmatpush.msra.mxu0 %v761
    %v763 = vand.u32 %v426, 4294901760
    %764 = vmatmul.f32.gmra.mxu0 %v763
    %v765 = vpop.f32.mrf.mxu0
    %v766 = vadd.f32 %v729, %v765
    %767 = vdwg.mxu0
    %v768 = vmul.f32 %v766, 0.03125
    %v769 = vadd.f32 %v768, 1e-05
    %v770 = vrsqrt.pop %v769
    %v771 = vmul.f32 %v770, %v769
    %v772 = vmul.f32 %v771, %v770
    %v773 = vmul.f32 0.5, %v772
    %v774 = vsub.f32 1.5, %v773
    %v775 = vmul.f32 %v770, %v774
    %vm776 = vweird.f32 %v769
    %vm777 = vweird.f32 %v770
    %vm778 = vmor %vm776, %vm777
    %v779 = vsel %vm778, %v770, %v775
    %v780 = vmul.f32 %v425, %v779
    %v781 = vld [vmem:[%s2] sm:$0x1]
    %v783 = vperm.slane %v781, 0
    %v785 = vmul.f32 %v780, %v783
    %v786 = vld [vmem:[%s3] sm:$0x1]
    %v788 = vperm.slane %v786, 0
    %v790 = vadd.f32 %v785, %v788
    %791 = vst [vmem:[#allocation8] sm:$0xf] %v790
    // Predicated region
    $region34: #{tpu_custom_call.1} parent=1 // pred_check
      _
    $region35: #{tpu_custom_call.1} parent=1 // pred_check_branch
      %793 = sbr.rel (0) target = $region37
    $region36: #{tpu_custom_call.1} parent=1 // pred_region
      %795 = vsyncadd [#allocation4], 0
      %s797 = sshll.u32 [#allocation8], 4
      %s798 = int_to_ptr.vmem [resolvable:$true] %s797
      %s799 = sshll.u32 %s5, 4
      %s800 = int_to_ptr.hbm [resolvable:$true] %s799
      %802 = dma.vmem_to_hbm [thread:$0]  %s798, 64, %s800, [#allocation4]
    $region37: #{tpu_custom_call.1} parent=1 // pred_fallthru
      _
    // Predicated region
    $region38: #{tpu_custom_call.1} parent=1 // pred_check
      _
    $region39: #{tpu_custom_call.1} parent=1 // pred_check_branch
      %804 = sbr.rel (0) target = $region41
    $region40: #{tpu_custom_call.1} parent=1 // pred_region
      %806 = dma.done [#allocation4], 64
    $region41: #{tpu_custom_call.1} parent=1 // pred_fallthru
      _
    %807 = vsyncpa [#allocation3], 1
    %808 = vsyncpa [#allocation6], 1
    %809 = vsyncpa [#allocation4], 1

</llo_original>
